<compile_context>
chip_gen: v6e
topology: v6e:2x2x1
jax: 0.10.0
libtpu: 0.0.40
codegen_flags: <defaults>
</compile_context>

<pallas_src>
import jax
import jax.numpy as jnp
from jax.experimental import pallas as pl
from jax.experimental.pallas import tpu as pltpu


_LANE = 128
_SUBLANE = 8
_VMEM_BUDGET = 48 << 20       # conservative working-set budget (fits v7x 64 MiB physical)
_VMEM_LIMIT_CAP = 56 << 20    # never ask the compiler for more than this


def _round_up(n, m):
    return ((n + m - 1) // m) * m


def highway_kernel(x_ref, wt_ref, b_ref, o_ref):
    """One row tile: proj = x @ Wt + b (fused (Hp, 2Hp) MXU matmul), then
    relu/sigmoid/blend epilogue in f32, store in the I/O dtype."""
    x = x_ref[...]                                  # (tm, Hp), I/O dtype (f32 or bf16)
    hp = x.shape[-1]

    # Single 2Hp-wide RHS fills the 256-wide MXU (v6e/v7x) with one LHS push;
    # f32 accumulate via preferred_element_type.
    proj = jnp.dot(x.astype(wt_ref.dtype), wt_ref[...],
                   preferred_element_type=jnp.float32) + b_ref[...]

    # Column-hp slice is on a vreg-lane boundary (hp % 128 == 0) -> free.
    transform = jnp.maximum(proj[:, :hp], 0.0)      # ReLU (VPU, f32)
    # sigmoid(g) == 0.5*tanh(0.5*g) + 0.5 : tanh uses the otherwise-idle EUP slot.
    gate = 0.5 * jnp.tanh(0.5 * proj[:, hp:]) + 0.5

    xf = x.astype(jnp.float32)
    # gate*x + (1-gate)*transform == transform + gate*(x - transform)
    out = transform + gate * (xf - transform)
    o_ref[...] = out.astype(o_ref.dtype)


def prepare_params(weight, bias, *, mxu_dtype=jnp.bfloat16):
    """One-time parameter prep (hoisted out of the per-call forward path).

    weight: (2H, H) torch Linear layout; bias: (2H,).
    Returns a dict with the fused, transposed, lane-padded weight (Hp, 2Hp) in
    the MXU operand dtype and the fused f32 bias row (1, 2Hp), plus H / Hp.

    NOTE: mxu_dtype=bfloat16 (default) trades exact f32 parity with the
    PyTorch reference for MXU throughput; pass jnp.float32 for bit-level
    fidelity.
    """
    two_h, H = weight.shape
    assert two_h == 2 * H
    H_pad = _round_up(H, _LANE)

    wt = weight.T                                   # (H, 2H) so kernel does x @ wt
    wt_t, wt_g = wt[:, :H], wt[:, H:]
    b_t, b_g = bias[:H], bias[H:]

    if H_pad != H:
        # Zero-pad to a lane-dense width.  Padded output lanes become
        # relu(0)=0 (transform) and sigmoid(0)=0.5 (gate); with the zero-padded
        # seq columns the blended pad lanes are exactly 0 and are sliced off.
        pad2 = ((0, H_pad - H), (0, H_pad - H))
        wt_t = jnp.pad(wt_t, pad2)
        wt_g = jnp.pad(wt_g, pad2)
        b_t = jnp.pad(b_t, (0, H_pad - H))
        b_g = jnp.pad(b_g, (0, H_pad - H))

    wt_fused = jnp.concatenate([wt_t, wt_g], axis=1).astype(mxu_dtype)   # (Hp, 2Hp)
    b_fused = jnp.concatenate([b_t, b_g]).reshape(1, 2 * H_pad).astype(jnp.float32)
    return {"wt": wt_fused, "b": b_fused, "H": H, "H_pad": H_pad}


def _choose_tm(N, H_pad, in_itemsize, tm):
    if tm is None:
        # Target >= ~4 MiB of streamed seq bytes per grid step.
        tm = max(256, (4 << 20) // max(1, H_pad * in_itemsize))
        tm = min(_round_up(tm, _SUBLANE), 8192)
    else:
        tm = _round_up(int(tm), _SUBLANE)
    # Keep >= ~4 grid steps so the "parallel" axis can shard v7x's 2 TensorCores.
    tm = min(tm, _round_up(pl.cdiv(N, 4), _SUBLANE))
    # Never exceed the (rounded-up) row count.
    tm = max(_SUBLANE, min(tm, _round_up(N, _SUBLANE)))
    return tm


def highway_forward(seq, params, *, tm=None):
    """seq: (N, H) in f32 or bf16 (I/O dtype follows seq.dtype); params from
    prepare_params().  tm: optional row-tile override (rounded to mult. of 8)."""
    wt, b = params["wt"], params["b"]
    H, H_pad = params["H"], params["H_pad"]
    N, Hin = seq.shape
    assert Hin == H, f"expected hidden size {H}, got {Hin}"

    seq_in = seq if H_pad == H else jnp.pad(seq, ((0, 0), (0, H_pad - H)))

    in_isz = seq_in.dtype.itemsize
    out_isz = in_isz                                  # output dtype == input dtype
    w_isz = wt.dtype.itemsize

    tm = _choose_tm(N, H_pad, in_isz, tm)

    def vmem_est(t):
        stream = 2 * t * H_pad * (in_isz + out_isz)                  # double-buffered seq/out tiles
        weights = 2 * (H_pad * 2 * H_pad * w_isz + 2 * H_pad * 4)    # resident W, b (default dbl-buf)
        temps = 8 * t * H_pad * 4                                    # f32 proj + epilogue temporaries
        return stream + weights + temps

    while vmem_est(tm) > _VMEM_BUDGET and tm > _SUBLANE:
        tm = max(_SUBLANE, _round_up(tm // 2, _SUBLANE))

    vmem_limit = int(min(max(vmem_est(tm) + (4 << 20), 16 << 20), _VMEM_LIMIT_CAP))

    grid = pl.cdiv(N, tm)                             # ragged last tile handled by masking

    out = pl.pallas_call(
        highway_kernel,
        out_shape=jax.ShapeDtypeStruct((N, H_pad), seq_in.dtype),
        grid_spec=pltpu.PrefetchScalarGridSpec(
            num_scalar_prefetch=0,
            grid=(grid,),
            in_specs=[
                pl.BlockSpec((tm, H_pad), lambda i: (i, 0)),          # seq row tile (streamed)
                pl.BlockSpec((H_pad, 2 * H_pad), lambda i: (0, 0)),   # fused W^T (resident)
                pl.BlockSpec((1, 2 * H_pad), lambda i: (0, 0)),       # fused bias (resident)
            ],
            out_specs=pl.BlockSpec((tm, H_pad), lambda i: (i, 0)),
        ),
        compiler_params=pltpu.CompilerParams(
            # Row tiles are independent -> megacore sharding on v7x.
            dimension_semantics=("parallel",),
            vmem_limit_bytes=vmem_limit,
        ),
    )(seq_in, wt, b)

    if H_pad != H:
        out = out[:, :H]
    return out


def highway_reference(seq, weight, bias):
    H = seq.shape[-1]
    proj = seq @ weight.T + bias
    transform = jnp.maximum(proj[:, :H], 0.0)
    gate = jax.nn.sigmoid(proj[:, H:2 * H])
    return gate * seq + (1.0 - gate) * transform


if __name__ == "__main__":
    N = 8          # rows (batch * seq)
    H = 128        # opt.hidden_size

    key = jax.random.PRNGKey(0)
    k_seq, k_w, k_b = jax.random.split(key, 3)

    seq = jax.random.normal(k_seq, (N, H), dtype=jnp.float32)

    # Deterministic Linear(hidden, 2*hidden) params (torch layout: (out, in))
    bound = 1.0 / jnp.sqrt(H)
    weight = jax.random.uniform(k_w, (2 * H, H), minval=-bound, maxval=bound,
                                dtype=jnp.float32)
    bias = jax.random.uniform(k_b, (2 * H,), minval=-bound, maxval=bound,
                              dtype=jnp.float32)
    bias = bias.at[H:].set(1.0)   # post_init(): gate-half of bias filled with 1.0

    ref = highway_reference(seq, weight, bias)

    # 1) exact-f32 MXU path, f32 I/O: tight match vs reference
    p32 = prepare_params(weight, bias, mxu_dtype=jnp.float32)
    out32 = jax.block_until_ready(highway_forward(seq, p32))
    assert out32.shape == (N, H) and out32.dtype == jnp.float32
    assert jnp.allclose(out32, ref, atol=1e-5, rtol=1e-5), "f32 mismatch vs reference"

    # 2) bf16 I/O + bf16 MXU operands (f32 accumulate / f32 epilogue): halves HBM traffic
    pbf = prepare_params(weight, bias)                 # default mxu_dtype=bf16
    seq_bf = seq.astype(jnp.bfloat16)
    out_bf = jax.block_until_ready(highway_forward(seq_bf, pbf))
    assert out_bf.dtype == jnp.bfloat16
    ref_bf = highway_reference(seq_bf.astype(jnp.float32), weight, bias)
    assert jnp.allclose(out_bf.astype(jnp.float32), ref_bf, atol=4e-2, rtol=4e-2), \
        "bf16 mismatch vs reference"

    # 3) ragged N exercises the cdiv grid + masked last row tile
    N2 = 40
    seq2 = jax.random.normal(jax.random.PRNGKey(1), (N2, H), dtype=jnp.float32)
    out2 = jax.block_until_ready(highway_forward(seq2, p32, tm=16))
    ref2 = highway_reference(seq2, weight, bias)
    assert jnp.allclose(out2, ref2, atol=1e-5, rtol=1e-5), "ragged-N mismatch vs reference"

    # 4) non-multiple-of-128 hidden size (BiDAF-style) -> lane padding path
    H2 = 96
    k2w, k2b, k2s = jax.random.split(jax.random.PRNGKey(2), 3)
    bound2 = 1.0 / jnp.sqrt(H2)
    weight2 = jax.random.uniform(k2w, (2 * H2, H2), minval=-bound2, maxval=bound2,
                                 dtype=jnp.float32)
    bias2 = jax.random.uniform(k2b, (2 * H2,), minval=-bound2, maxval=bound2,
                               dtype=jnp.float32)
    bias2 = bias2.at[H2:].set(1.0)
    seq4 = jax.random.normal(k2s, (24, H2), dtype=jnp.float32)
    p2 = prepare_params(weight2, bias2, mxu_dtype=jnp.float32)
    out4 = jax.block_until_ready(highway_forward(seq4, p2))
    ref4 = highway_reference(seq4, weight2, bias2)
    assert out4.shape == (24, H2)
    assert jnp.allclose(out4, ref4, atol=1e-5, rtol=1e-5), "padded-H mismatch vs reference"

    print("KERNEL_OK")
</pallas_src>

<mosaic_0001>
module attributes {stable_mosaic.version = 11 : i64} {
  func.func @highway_kernel(%arg0: i32, %arg1: memref<8x128xf32, #tpu.memory_space<vmem>>, %arg2: memref<128x256xf32, #tpu.memory_space<vmem>>, %arg3: memref<1x256xf32, #tpu.memory_space<vmem>>, %arg4: memref<8x128xf32, #tpu.memory_space<vmem>>) attributes {dimension_semantics = [#tpu.dimension_semantics<parallel>], iteration_bounds = array<i64: 1>, scalar_prefetch = 0 : i64, scratch_operands = 0 : i64, tpu.core_type = #tpu.core_type<tc>, window_params = [{transform_indices = @transform_0, window_bounds = array<i64: 8, 128>}, {pipeline_mode = #tpu.pipeline_mode<synchronous>, transform_indices = @transform_1, window_bounds = array<i64: 128, 256>}, {pipeline_mode = #tpu.pipeline_mode<synchronous>, transform_indices = @transform_2, window_bounds = array<i64: 1, 256>}, {transform_indices = @transform_3, window_bounds = array<i64: 8, 128>}]} {
    %c0 = arith.constant 0 : index
    %c0_0 = arith.constant 0 : index
    %0 = vector.load %arg1[%c0, %c0_0] : memref<8x128xf32, #tpu.memory_space<vmem>>, vector<8x128xf32>
    %c0_1 = arith.constant 0 : index
    %c0_2 = arith.constant 0 : index
    %1 = vector.load %arg2[%c0_1, %c0_2] : memref<128x256xf32, #tpu.memory_space<vmem>>, vector<128x256xf32>
    %cst = arith.constant dense<0.000000e+00> : vector<8x256xf32>
    %2 = tpu.matmul %0, %1, %cst {dimension_numbers = #tpu.dot_dimension_numbers<[1], [0], [0], [1], [0, 0, 1, 1], [], []>} : vector<8x128xf32>, vector<128x256xf32>, vector<8x256xf32> -> vector<8x256xf32>
    %c0_3 = arith.constant 0 : index
    %c0_4 = arith.constant 0 : index
    %3 = vector.load %arg3[%c0_3, %c0_4] : memref<1x256xf32, #tpu.memory_space<vmem>>, vector<1x256xf32>
    %4 = vector.broadcast %3 : vector<1x256xf32> to vector<8x256xf32>
    %5 = arith.addf %2, %4 : vector<8x256xf32>
    %6 = vector.extract_strided_slice %5 {offsets = [0, 0], sizes = [8, 128], strides = [1, 1]} : vector<8x256xf32> to vector<8x128xf32>
    %cst_5 = arith.constant 0.000000e+00 : f32
    %7 = vector.broadcast %cst_5 : f32 to vector<8x128xf32>
    %8 = arith.maximumf %6, %7 : vector<8x128xf32>
    %9 = vector.extract_strided_slice %5 {offsets = [0, 128], sizes = [8, 128], strides = [1, 1]} : vector<8x256xf32> to vector<8x128xf32>
    %cst_6 = arith.constant 5.000000e-01 : f32
    %10 = vector.broadcast %cst_6 : f32 to vector<8x128xf32>
    %11 = arith.mulf %10, %9 : vector<8x128xf32>
    %12 = math.tanh %11 : vector<8x128xf32>
    %cst_7 = arith.constant 5.000000e-01 : f32
    %13 = vector.broadcast %cst_7 : f32 to vector<8x128xf32>
    %14 = arith.mulf %13, %12 : vector<8x128xf32>
    %cst_8 = arith.constant 5.000000e-01 : f32
    %15 = vector.broadcast %cst_8 : f32 to vector<8x128xf32>
    %16 = arith.addf %14, %15 : vector<8x128xf32>
    %17 = arith.subf %0, %8 : vector<8x128xf32>
    %18 = arith.mulf %16, %17 : vector<8x128xf32>
    %19 = arith.addf %8, %18 : vector<8x128xf32>
    %c0_9 = arith.constant 0 : index
    %c0_10 = arith.constant 0 : index
    %20 = vector.load %arg4[%c0_9, %c0_10] : memref<8x128xf32, #tpu.memory_space<vmem>>, vector<8x128xf32>
    tpu.vector_store %arg4[%c0_9, %c0_10], %19 {strides = array<i32>} : memref<8x128xf32, #tpu.memory_space<vmem>>, vector<8x128xf32>,
    return
  }
  func.func @transform_0(%arg0: i32) -> (i32, i32) {
    %c0_i32 = arith.constant 0 : i32
    %c0_i32_0 = arith.constant 0 : i32
    return %arg0, %c0_i32 : i32, i32
  }
  func.func @transform_1(%arg0: i32) -> (i32, i32) {
    %c0_i32 = arith.constant 0 : i32
    %c0_i32_0 = arith.constant 0 : i32
    %c0_i32_1 = arith.constant 0 : i32
    return %c0_i32, %c0_i32_0 : i32, i32
  }
  func.func @transform_2(%arg0: i32) -> (i32, i32) {
    %c0_i32 = arith.constant 0 : i32
    %c0_i32_0 = arith.constant 0 : i32
    %c0_i32_1 = arith.constant 0 : i32
    return %c0_i32, %c0_i32_0 : i32, i32
  }
  func.func @transform_3(%arg0: i32) -> (i32, i32) {
    %c0_i32 = arith.constant 0 : i32
    %c0_i32_0 = arith.constant 0 : i32
    return %arg0, %c0_i32 : i32, i32
  }
}

</mosaic_0001>

<llo_original>
// kernel: tpu_custom_call.1
$region0: #{tpu_custom_call.1}
  #allocation0 [shape = 'u32[]', space=smem, size = 0x4, offset = 0x4, fixed_abs, tag = 'smem constant byte address 0x4 - core index']
  #allocation1 [shape = 'u32[144,128]{1,0:T(1,128)}', space=vmem, size = 0x12000, scoped, tag = 'internal scratch']
  %s0 = inlined_call_operand.hbm [shape: f32[8,128], index: 0, kind: input, shape index: {}]
  %s1 = inlined_call_operand.hbm [shape: f32[128,256], index: 1, kind: input, shape index: {}]
  %s2 = inlined_call_operand.vmem [shape: f32[1,256], index: 2, kind: input, shape index: {}]
  %s3 = inlined_call_operand.hbm [shape: f32[8,128], index: 3, kind: output, shape index: {}]
  %s4 = sld [smem:[#allocation0]]
  $region30: #{tpu_custom_call.1} parent=0
    _
  %s6 = ssub.s32 1, %s4
  %s7 = scalar_select 0, %s6, %s4
  $region1: #{tpu_custom_call.1} parent=0
    #allocation2 [shape = 'u8[4096]{0}', space=vmem, size = 0x1000, scoped, tag = 'input window, operand 0, single buffered']
    #allocation3 [shape = 's32[1]{0}', space=sflag, size = 0x4, scoped, tag = 'scoped memory for tpu_custom_call.1']
    #allocation4 [shape = 's32[1]{0}', space=sflag, size = 0x4, scoped, tag = 'scoped memory for tpu_custom_call.1']
    #allocation5 [shape = 'u8[131072]{0}', space=vmem, size = 0x20000, scoped, tag = 'input window, operand 1, single buffered']
    #allocation6 [shape = 's32[1]{0}', space=sflag, size = 0x4, scoped, tag = 'scoped memory for tpu_custom_call.1']
    #allocation7 [shape = 'u8[4096]{0}', space=vmem, size = 0x1000, scoped, tag = 'output window, operand 0, single buffered']
    %8 = vsyncpa [#allocation3], 0
    %9 = vsyncpa [#allocation6], 0
    %10 = vsyncpa [#allocation4], 0
    // Predicated region
    $region2: #{tpu_custom_call.1} parent=1 // pred_check
      _
    $region3: #{tpu_custom_call.1} parent=1 // pred_check_branch
      %12 = sbr.rel (0) target = $region5
    $region4: #{tpu_custom_call.1} parent=1 // pred_region
      %s14 = ssub.s32 128, 128
      %15 = vsyncadd [#allocation3], %s14
      %s17 = sshll.u32 [#allocation2], 4
      %s18 = int_to_ptr.vmem [resolvable:$true] %s17
      %20 = dma.hbm_to_vmem [thread:$0]  %s0, 128, %s18, [#allocation3]
    $region5: #{tpu_custom_call.1} parent=1 // pred_fallthru
      _
    // Predicated region
    $region6: #{tpu_custom_call.1} parent=1 // pred_check
      _
    $region7: #{tpu_custom_call.1} parent=1 // pred_check_branch
      %22 = sbr.rel (0) target = $region9
    $region8: #{tpu_custom_call.1} parent=1 // pred_region
      %s24 = ssub.s32 4096, 4096
      %25 = vsyncadd [#allocation6], %s24
      %s26 = sshll.u32 [#allocation5], 4
      %s27 = int_to_ptr.vmem [resolvable:$true] %s26
      %32 = dma.hbm_to_vmem [thread:$0]  %s1, 4096, %s27, [#allocation6], 256, 256, 16
    $region9: #{tpu_custom_call.1} parent=1 // pred_fallthru
      _
    // Predicated region
    $region10: #{tpu_custom_call.1} parent=1 // pred_check
      _
    $region11: #{tpu_custom_call.1} parent=1 // pred_check_branch
      %34 = sbr.rel (0) target = $region13
    $region12: #{tpu_custom_call.1} parent=1 // pred_region
      _
    $region13: #{tpu_custom_call.1} parent=1 // pred_fallthru
      _
    // Predicated region
    $region14: #{tpu_custom_call.1} parent=1 // pred_check
      _
    $region15: #{tpu_custom_call.1} parent=1 // pred_check_branch
      %36 = sbr.rel (0) target = $region17
    $region16: #{tpu_custom_call.1} parent=1 // pred_region
      %37 = dma.done [#allocation3], 128
    $region17: #{tpu_custom_call.1} parent=1 // pred_fallthru
      _
    // Predicated region
    $region18: #{tpu_custom_call.1} parent=1 // pred_check
      _
    $region19: #{tpu_custom_call.1} parent=1 // pred_check_branch
      %39 = sbr.rel (0) target = $region21
    $region20: #{tpu_custom_call.1} parent=1 // pred_region
      %40 = dma.done [#allocation6], 4096
    $region21: #{tpu_custom_call.1} parent=1 // pred_fallthru
      _
    %v41 = vld [vmem:[#allocation2] sm:$0xff]
    %v42 = vld [vmem:[#allocation5] sm:$0xff]
    %v43 = vld [vmem:[#allocation5 + $0x8] sm:$0xff]
    %v44 = vld [vmem:[#allocation5 + $0x10] sm:$0xff]
    %v45 = vld [vmem:[#allocation5 + $0x18] sm:$0xff]
    %v46 = vld [vmem:[#allocation5 + $0x20] sm:$0xff]
    %v47 = vld [vmem:[#allocation5 + $0x28] sm:$0xff]
    %v48 = vld [vmem:[#allocation5 + $0x30] sm:$0xff]
    %v49 = vld [vmem:[#allocation5 + $0x38] sm:$0xff]
    %v50 = vld [vmem:[#allocation5 + $0x40] sm:$0xff]
    %v51 = vld [vmem:[#allocation5 + $0x48] sm:$0xff]
    %v52 = vld [vmem:[#allocation5 + $0x50] sm:$0xff]
    %v53 = vld [vmem:[#allocation5 + $0x58] sm:$0xff]
    %v54 = vld [vmem:[#allocation5 + $0x60] sm:$0xff]
    %v55 = vld [vmem:[#allocation5 + $0x68] sm:$0xff]
    %v56 = vld [vmem:[#allocation5 + $0x70] sm:$0xff]
    %v57 = vld [vmem:[#allocation5 + $0x78] sm:$0xff]
    %v58 = vld [vmem:[#allocation5 + $0x80] sm:$0xff]
    %v59 = vld [vmem:[#allocation5 + $0x88] sm:$0xff]
    %v60 = vld [vmem:[#allocation5 + $0x90] sm:$0xff]
    %v61 = vld [vmem:[#allocation5 + $0x98] sm:$0xff]
    %v62 = vld [vmem:[#allocation5 + $0xa0] sm:$0xff]
    %v63 = vld [vmem:[#allocation5 + $0xa8] sm:$0xff]
    %v64 = vld [vmem:[#allocation5 + $0xb0] sm:$0xff]
    %v65 = vld [vmem:[#allocation5 + $0xb8] sm:$0xff]
    %v66 = vld [vmem:[#allocation5 + $0xc0] sm:$0xff]
    %v67 = vld [vmem:[#allocation5 + $0xc8] sm:$0xff]
    %v68 = vld [vmem:[#allocation5 + $0xd0] sm:$0xff]
    %v69 = vld [vmem:[#allocation5 + $0xd8] sm:$0xff]
    %v70 = vld [vmem:[#allocation5 + $0xe0] sm:$0xff]
    %v71 = vld [vmem:[#allocation5 + $0xe8] sm:$0xff]
    %v72 = vld [vmem:[#allocation5 + $0xf0] sm:$0xff]
    %v73 = vld [vmem:[#allocation5 + $0xf8] sm:$0xff]
    %v74 = vld [vmem:[%s2] sm:$0x3]
    %v76 = vlaneseq
    %v77 = vshrl.u32 %v76, 7
    %v78 = vsub.s32 0, %v77
    %v79 = vrot.slane %v74, %v78
    %v80 = vlaneseq
    %v81 = vshrl.u32 %v80, 7
    %v82 = vsub.s32 1, %v81
    %v83 = vrot.slane %v74, %v82
    %86 = vmatprep.subr.mxu0 %v73
    %87 = vmatpush1.msra.mxu0 %v72
    %88 = vmatprep.subr.mxu0 %v71
    %89 = vmatpush1.msra.mxu0 %v70
    %90 = vmatprep.subr.mxu0 %v69
    %91 = vmatpush1.msra.mxu0 %v68
    %92 = vmatprep.subr.mxu0 %v67
    %93 = vmatpush1.msra.mxu0 %v66
    %94 = vmatprep.subr.mxu0 %v65
    %95 = vmatpush1.msra.mxu0 %v64
    %96 = vmatprep.subr.mxu0 %v63
    %97 = vmatpush1.msra.mxu0 %v62
    %98 = vmatprep.subr.mxu0 %v61
    %99 = vmatpush1.msra.mxu0 %v60
    %100 = vmatprep.subr.mxu0 %v59
    %101 = vmatpush1.msra.mxu0 %v58
    %102 = vmatprep.subr.mxu0 %v57
    %103 = vmatpush1.msra.mxu0 %v56
    %104 = vmatprep.subr.mxu0 %v55
    %105 = vmatpush1.msra.mxu0 %v54
    %106 = vmatprep.subr.mxu0 %v53
    %107 = vmatpush1.msra.mxu0 %v52
    %108 = vmatprep.subr.mxu0 %v51
    %109 = vmatpush1.msra.mxu0 %v50
    %110 = vmatprep.subr.mxu0 %v49
    %111 = vmatpush1.msra.mxu0 %v48
    %112 = vmatprep.subr.mxu0 %v47
    %113 = vmatpush1.msra.mxu0 %v46
    %114 = vmatprep.subr.mxu0 %v45
    %115 = vmatpush1.msra.mxu0 %v44
    %116 = vmatprep.subr.mxu0 %v43
    %117 = vmatpush1.msra.mxu0 %v42
    %118 = vmatprep.subr.mxu0 0.0
    %119 = vmatpush2.msra.mxu0 0.0
    %120 = vmatprep.subr.mxu0 0.0
    %121 = vmatpush2.msra.mxu0 0.0
    %122 = vmatprep.subr.mxu0 0.0
    %123 = vmatpush2.msra.mxu0 0.0
    %124 = vmatprep.subr.mxu0 0.0
    %125 = vmatpush2.msra.mxu0 0.0
    %126 = vmatprep.subr.mxu0 0.0
    %127 = vmatpush2.msra.mxu0 0.0
    %128 = vmatprep.subr.mxu0 0.0
    %129 = vmatpush2.msra.mxu0 0.0
    %130 = vmatprep.subr.mxu0 0.0
    %131 = vmatpush2.msra.mxu0 0.0
    %132 = vmatprep.subr.mxu0 0.0
    %133 = vmatpush2.msra.mxu0 0.0
    %134 = vmatprep.subr.mxu0 0.0
    %135 = vmatpush2.msra.mxu0 0.0
    %136 = vmatprep.subr.mxu0 0.0
    %137 = vmatpush2.msra.mxu0 0.0
    %138 = vmatprep.subr.mxu0 0.0
    %139 = vmatpush2.msra.mxu0 0.0
    %140 = vmatprep.subr.mxu0 0.0
    %141 = vmatpush2.msra.mxu0 0.0
    %142 = vmatprep.subr.mxu0 0.0
    %143 = vmatpush2.msra.mxu0 0.0
    %144 = vmatprep.subr.mxu0 0.0
    %145 = vmatpush2.msra.mxu0 0.0
    %146 = vmatprep.subr.mxu0 0.0
    %147 = vmatpush2.msra.mxu0 0.0
    %148 = vmatprep.subr.mxu0 0.0
    %149 = vmatpush2.msra.mxu0 0.0
    %150 = vmatprep.mubr.f32.mxu0 0.0
    %151 = vmatmul.mubr.f32.gmra.mxu0 %v41
    %v152 = vpop.f32.mrf.mxu0
    %v153 = vadd.f32 %v79, %v152
    %v154 = vpop.f32.mrf.mxu0
    %v155 = vadd.f32 %v83, %v154
    %156 = vdwg.mxu0
    %v157 = vmax.f32 %v153, 0.0
    %v158 = vmul.f32 %v155, 0.5
    %v159 = vtanh.pop %v158
    %v160 = vmul.f32 %v159, 0.5
    %v161 = vadd.f32 %v160, 0.5
    %v162 = vsub.f32 %v41, %v157
    %v163 = vmul.f32 %v161, %v162
    %v164 = vadd.f32 %v157, %v163
    %165 = vst [vmem:[#allocation7] sm:$0xff] %v164
    // Predicated region
    $region22: #{tpu_custom_call.1} parent=1 // pred_check
      _
    $region23: #{tpu_custom_call.1} parent=1 // pred_check_branch
      %167 = sbr.rel (0) target = $region25
    $region24: #{tpu_custom_call.1} parent=1 // pred_region
      %s169 = ssub.s32 128, 128
      %170 = vsyncadd [#allocation4], %s169
      %s172 = sshll.u32 [#allocation7], 4
      %s173 = int_to_ptr.vmem [resolvable:$true] %s172
      %175 = dma.vmem_to_hbm [thread:$0]  %s173, 128, %s3, [#allocation4]
    $region25: #{tpu_custom_call.1} parent=1 // pred_fallthru
      _
    // Predicated region
    $region26: #{tpu_custom_call.1} parent=1 // pred_check
      _
    $region27: #{tpu_custom_call.1} parent=1 // pred_check_branch
      %177 = sbr.rel (0) target = $region29
    $region28: #{tpu_custom_call.1} parent=1 // pred_region
      %178 = dma.done [#allocation4], 128
    $region29: #{tpu_custom_call.1} parent=1 // pred_fallthru
      _
    %179 = vsyncpa [#allocation3], 1
    %180 = vsyncpa [#allocation6], 1
    %181 = vsyncpa [#allocation4], 1

</llo_original>
